<compile_context>
chip_gen: v5e
topology: v5e:2x2
jax: 0.10.0
libtpu: 0.0.40
codegen_flags: <defaults>
</compile_context>

<pallas_src>
import jax
import jax.numpy as jnp
from jax import lax
from jax.experimental import pallas as pl
from jax.experimental.pallas import tpu as pltpu


def _self_attention_kernel(q_ref, kv_ref, o_ref):
    # q_ref:  (BB, TQ, D)   query tile, input dtype
    # kv_ref: (BB, S,  D)   full candidate set for these batch elements
    # o_ref:  (BB, TQ, D)
    q = q_ref[...]
    kv = kv_ref[...]

    # scores[b, i, j] = <q_i, kv_j>  -> (BB, TQ, S).  Contraction over D on
    # both operands (no explicit transpose); f32 accumulation on the MXU.
    scores = lax.dot_general(
        q, kv,
        dimension_numbers=(((2,), (2,)), ((0,), (0,))),
        preferred_element_type=jnp.float32,
    )

    # Numerically-stable softmax numerator; normalization is deferred until
    # after the second matmul.
    m = jnp.max(scores, axis=-1, keepdims=True)
    e = jnp.exp(scores - m)                           # (BB, TQ, S) f32
    l = jnp.sum(e, axis=-1, keepdims=True)            # (BB, TQ, 1) f32

    # acc[b, i, :] = sum_j e[b, i, j] * kv[b, j, :]  -> (BB, TQ, D)
    acc = lax.dot_general(
        e.astype(kv.dtype), kv,
        dimension_numbers=(((2,), (1,)), ((0,), (0,))),
        preferred_element_type=jnp.float32,
    )

    # Normalize after AV: (TQ, D)-sized multiply, reciprocal on the EUP.
    o_ref[...] = (acc * pl.reciprocal(l, approx=True)).astype(o_ref.dtype)


def _choose_batch_block(B: int, S: int) -> int:
    """Pack enough batch elements per step that BB*S covers >=128 sublanes."""
    target = max(1, pl.cdiv(128, max(S, 1)))
    bb = min(B, target)
    while bb > 1 and B % bb != 0:
        bb -= 1
    return max(bb, 1)


def _choose_query_tile(S: int) -> int:
    """Query tile: full S when small, else a 128-aligned divisor of S."""
    for cand in (512, 256, 128):
        if S > cand and S % cand == 0:
            return cand
    return S


def self_attention(candidate_vector: jax.Array) -> jax.Array:
    """candidate_vector: (B, S, D) -> (B, S, D)"""
    B, S, D = candidate_vector.shape
    bb = _choose_batch_block(B, S)
    tq = _choose_query_tile(S)

    grid = (B // bb, S // tq)

    return pl.pallas_call(
        _self_attention_kernel,
        out_shape=jax.ShapeDtypeStruct((B, S, D), candidate_vector.dtype),
        grid_spec=pltpu.PrefetchScalarGridSpec(
            num_scalar_prefetch=0,
            grid=grid,
            in_specs=[
                # Query tile: (bb, tq, D)
                pl.BlockSpec((bb, tq, D), lambda b, q: (b, q, 0)),
                # Full candidate set (keys/values) for these batch elements.
                pl.BlockSpec((bb, S, D), lambda b, q: (b, 0, 0)),
            ],
            out_specs=pl.BlockSpec((bb, tq, D), lambda b, q: (b, q, 0)),
        ),
        compiler_params=pltpu.CompilerParams(
            # Both axes are independent -> megacore / multi-TC sharding.
            dimension_semantics=("parallel", "parallel"),
            # NOTE: for large S on v6e one can raise vmem_limit_bytes here;
            # left at default since test shapes are tiny and v7x has 64 MiB.
        ),
    )(candidate_vector, candidate_vector)


def _reference(x):
    scores = jnp.einsum("bsd,btd->bst", x, x)
    w = jax.nn.softmax(scores, axis=2)
    return jnp.einsum("bst,btd->bsd", w, x)


if __name__ == "__main__":
    key = jax.random.PRNGKey(0)
    B, S, D = 2, 8, 32  # batch, candidate_size, candidate_vector_dim
    x = jax.random.normal(key, (B, S, D), dtype=jnp.float32)

    out = self_attention(x)
    jax.block_until_ready(out)

    ref = _reference(x)
    assert out.shape == (B, S, D)
    # approx=True reciprocal -> slightly looser tolerance than exact f32.
    assert jnp.allclose(out, ref, atol=2e-3, rtol=2e-3), "mismatch vs reference"

    print("KERNEL_OK")
</pallas_src>

<mosaic_0001>
module attributes {stable_mosaic.version = 11 : i64} {
  func.func @_self_attention_kernel(%arg0: i32, %arg1: i32, %arg2: memref<2x8x32xf32, #tpu.memory_space<vmem>>, %arg3: memref<2x8x32xf32, #tpu.memory_space<vmem>>, %arg4: memref<2x8x32xf32, #tpu.memory_space<vmem>>) attributes {dimension_semantics = [#tpu.dimension_semantics<parallel>, #tpu.dimension_semantics<parallel>], iteration_bounds = array<i64: 1, 1>, scalar_prefetch = 0 : i64, scratch_operands = 0 : i64, tpu.core_type = #tpu.core_type<tc>, window_params = [{transform_indices = @transform_0, window_bounds = array<i64: 2, 8, 32>}, {transform_indices = @transform_1, window_bounds = array<i64: 2, 8, 32>}, {transform_indices = @transform_2, window_bounds = array<i64: 2, 8, 32>}]} {
    %c0 = arith.constant 0 : index
    %c0_0 = arith.constant 0 : index
    %c0_1 = arith.constant 0 : index
    %0 = vector.load %arg2[%c0, %c0_0, %c0_1] : memref<2x8x32xf32, #tpu.memory_space<vmem>>, vector<2x8x32xf32>
    %c0_2 = arith.constant 0 : index
    %c0_3 = arith.constant 0 : index
    %c0_4 = arith.constant 0 : index
    %1 = vector.load %arg3[%c0_2, %c0_3, %c0_4] : memref<2x8x32xf32, #tpu.memory_space<vmem>>, vector<2x8x32xf32>
    %cst = arith.constant dense<0.000000e+00> : vector<2x8x8xf32>
    %2 = tpu.matmul %0, %1, %cst {dimension_numbers = #tpu.dot_dimension_numbers<[2], [2], [1], [1], [0, 0, 0, 1, 1, 1], [0], [0]>} : vector<2x8x32xf32>, vector<2x8x32xf32>, vector<2x8x8xf32> -> vector<2x8x8xf32>
    %cst_5 = arith.constant dense<0xFF800000> : vector<2x8xf32>
    %3 = vector.multi_reduction <maximumf>, %2, %cst_5 [2] : vector<2x8x8xf32> to vector<2x8xf32>
    %4 = vector.shape_cast %3 : vector<2x8xf32> to vector<2x8x1xf32>
    %5 = vector.broadcast %4 : vector<2x8x1xf32> to vector<2x8x8xf32>
    %6 = arith.subf %2, %5 : vector<2x8x8xf32>
    %7 = math.exp %6 : vector<2x8x8xf32>
    %cst_6 = arith.constant dense<0.000000e+00> : vector<2x8xf32>
    %8 = vector.multi_reduction <add>, %7, %cst_6 [2] : vector<2x8x8xf32> to vector<2x8xf32>
    %9 = vector.shape_cast %8 : vector<2x8xf32> to vector<2x8x1xf32>
    %cst_7 = arith.constant dense<0.000000e+00> : vector<2x8x32xf32>
    %10 = tpu.matmul %7, %1, %cst_7 {dimension_numbers = #tpu.dot_dimension_numbers<[2], [1], [1], [2], [0, 0, 0, 1, 1, 2], [0], [0]>} : vector<2x8x8xf32>, vector<2x8x32xf32>, vector<2x8x32xf32> -> vector<2x8x32xf32>
    %11 = tpu.reciprocal %9 {approx = true} : vector<2x8x1xf32> -> vector<2x8x1xf32>
    %12 = vector.broadcast %11 : vector<2x8x1xf32> to vector<2x8x32xf32>
    %13 = arith.mulf %10, %12 : vector<2x8x32xf32>
    %c0_8 = arith.constant 0 : index
    %c0_9 = arith.constant 0 : index
    %c0_10 = arith.constant 0 : index
    %14 = vector.load %arg4[%c0_8, %c0_9, %c0_10] : memref<2x8x32xf32, #tpu.memory_space<vmem>>, vector<2x8x32xf32>
    tpu.vector_store %arg4[%c0_8, %c0_9, %c0_10], %13 {strides = array<i32>} : memref<2x8x32xf32, #tpu.memory_space<vmem>>, vector<2x8x32xf32>,
    return
  }
  func.func @transform_0(%arg0: i32, %arg1: i32) -> (i32, i32, i32) {
    %c0_i32 = arith.constant 0 : i32
    %c0_i32_0 = arith.constant 0 : i32
    return %arg0, %arg1, %c0_i32 : i32, i32, i32
  }
  func.func @transform_1(%arg0: i32, %arg1: i32) -> (i32, i32, i32) {
    %c0_i32 = arith.constant 0 : i32
    %c0_i32_0 = arith.constant 0 : i32
    %c0_i32_1 = arith.constant 0 : i32
    return %arg0, %c0_i32, %c0_i32_0 : i32, i32, i32
  }
  func.func @transform_2(%arg0: i32, %arg1: i32) -> (i32, i32, i32) {
    %c0_i32 = arith.constant 0 : i32
    %c0_i32_0 = arith.constant 0 : i32
    return %arg0, %arg1, %c0_i32 : i32, i32, i32
  }
}

</mosaic_0001>

<llo_original>
// kernel: tpu_custom_call.1
$region0: #{tpu_custom_call.1}
  #allocation0 [shape = 'u32[]', space=smem, size = 0x4, offset = 0x4, fixed_abs, tag = 'smem constant byte address 0x4 - core index']
  #allocation1 [shape = 'u32[72,128]{1,0:T(1,128)}', space=vmem, size = 0x9000, scoped, tag = 'internal scratch']
  %s0 = inlined_call_operand.hbm [shape: f32[2,8,32], index: 0, kind: input, shape index: {}]
  %s1 = inlined_call_operand.hbm [shape: f32[2,8,32], index: 1, kind: input, shape index: {}]
  %s2 = inlined_call_operand.hbm [shape: f32[2,8,32], index: 2, kind: output, shape index: {}]
  %s3 = sld [smem:[#allocation0]]
  $region26: #{tpu_custom_call.1} parent=0
    _
  %s5 = ssub.s32 1, %s3
  %s6 = scalar_select 0, %s5, %s3
  $region1: #{tpu_custom_call.1} parent=0
    #allocation2 [shape = 'u8[8192]{0}', space=vmem, size = 0x2000, scoped, tag = 'input window, operand 0, single buffered']
    #allocation3 [shape = 's32[1]{0}', space=sflag, size = 0x4, scoped, tag = 'scoped memory for tpu_custom_call.1']
    #allocation4 [shape = 's32[1]{0}', space=sflag, size = 0x4, scoped, tag = 'scoped memory for tpu_custom_call.1']
    #allocation5 [shape = 'u8[8192]{0}', space=vmem, size = 0x2000, scoped, tag = 'input window, operand 1, single buffered']
    #allocation6 [shape = 's32[1]{0}', space=sflag, size = 0x4, scoped, tag = 'scoped memory for tpu_custom_call.1']
    #allocation7 [shape = 'u8[8192]{0}', space=vmem, size = 0x2000, scoped, tag = 'output window, operand 0, single buffered']
    %7 = vsyncpa [#allocation3], 0
    %8 = vsyncpa [#allocation6], 0
    %9 = vsyncpa [#allocation4], 0
    // Predicated region
    $region2: #{tpu_custom_call.1} parent=1 // pred_check
      _
    $region3: #{tpu_custom_call.1} parent=1 // pred_check_branch
      %11 = sbr.rel (0) target = $region5
    $region4: #{tpu_custom_call.1} parent=1 // pred_region
      %13 = vsyncadd [#allocation3], 0
      %s14 = sshll.u32 %s0, 4
      %s15 = int_to_ptr.hbm [resolvable:$true] %s14
      %s16 = sshll.u32 [#allocation2], 4
      %s17 = int_to_ptr.vmem [resolvable:$true] %s16
      %22 = dma.hbm_to_vmem [thread:$0]  %s15, 256, %s17, [#allocation3], 128, 128, 8
    $region5: #{tpu_custom_call.1} parent=1 // pred_fallthru
      _
    // Predicated region
    $region6: #{tpu_custom_call.1} parent=1 // pred_check
      _
    $region7: #{tpu_custom_call.1} parent=1 // pred_check_branch
      %24 = sbr.rel (0) target = $region9
    $region8: #{tpu_custom_call.1} parent=1 // pred_region
      %26 = vsyncadd [#allocation6], 0
      %s27 = sshll.u32 %s1, 4
      %s28 = int_to_ptr.hbm [resolvable:$true] %s27
      %s29 = sshll.u32 [#allocation5], 4
      %s30 = int_to_ptr.vmem [resolvable:$true] %s29
      %35 = dma.hbm_to_vmem [thread:$0]  %s28, 256, %s30, [#allocation6], 128, 128, 8
    $region9: #{tpu_custom_call.1} parent=1 // pred_fallthru
      _
    // Predicated region
    $region10: #{tpu_custom_call.1} parent=1 // pred_check
      _
    $region11: #{tpu_custom_call.1} parent=1 // pred_check_branch
      %37 = sbr.rel (0) target = $region13
    $region12: #{tpu_custom_call.1} parent=1 // pred_region
      %39 = dma.done [#allocation3], 256
    $region13: #{tpu_custom_call.1} parent=1 // pred_fallthru
      _
    // Predicated region
    $region14: #{tpu_custom_call.1} parent=1 // pred_check
      _
    $region15: #{tpu_custom_call.1} parent=1 // pred_check_branch
      %41 = sbr.rel (0) target = $region17
    $region16: #{tpu_custom_call.1} parent=1 // pred_region
      %43 = dma.done [#allocation6], 256
    $region17: #{tpu_custom_call.1} parent=1 // pred_fallthru
      _
    %v44 = vld [vmem:[#allocation2] sm:$0xff]
    %v45 = vld [vmem:[#allocation2 + $0x8] sm:$0xff]
    %v46 = vld [vmem:[#allocation5] sm:$0xff]
    %v47 = vld [vmem:[#allocation5 + $0x8] sm:$0xff]
    %vm48 = vcmask 261120
    %v50 = vsel %vm48, %v44, 0
    %v53 = vsel %vm48, %v46, 0
    %55 = vmatpush.xpose.msra.mxu0 0.0
    %56 = vmatpush.xpose.msra.mxu0 0.0
    %57 = vmatpush.xpose.msra.mxu0 0.0
    %58 = vmatpush.xpose.msra.mxu0 0.0
    %59 = vmatpush.xpose.msra.mxu0 0.0
    %60 = vmatpush.xpose.msra.mxu0 0.0
    %61 = vmatpush.xpose.msra.mxu0 0.0
    %62 = vmatpush.xpose.msra.mxu0 0.0
    %63 = vmatpush.xpose.msra.mxu0 0.0
    %64 = vmatpush.xpose.msra.mxu0 0.0
    %65 = vmatpush.xpose.msra.mxu0 0.0
    %66 = vmatpush.xpose.msra.mxu0 0.0
    %67 = vmatpush.xpose.msra.mxu0 0.0
    %68 = vmatpush.xpose.msra.mxu0 0.0
    %69 = vmatpush.xpose.msra.mxu0 0.0
    %70 = vmatpush.xpose.msra.mxu0 %v53
    %71 = vmatmul.f32.gmra.mxu0 %v50
    %v72 = vpop.f32.mrf.mxu0
    %v73 = vadd.f32 0.0, %v72
    %74 = vdwg.mxu0
    %v76 = vsel %vm48, %v45, 0
    %v79 = vsel %vm48, %v47, 0
    %81 = vmatpush.xpose.msra.mxu0 0.0
    %82 = vmatpush.xpose.msra.mxu0 0.0
    %83 = vmatpush.xpose.msra.mxu0 0.0
    %84 = vmatpush.xpose.msra.mxu0 0.0
    %85 = vmatpush.xpose.msra.mxu0 0.0
    %86 = vmatpush.xpose.msra.mxu0 0.0
    %87 = vmatpush.xpose.msra.mxu0 0.0
    %88 = vmatpush.xpose.msra.mxu0 0.0
    %89 = vmatpush.xpose.msra.mxu0 0.0
    %90 = vmatpush.xpose.msra.mxu0 0.0
    %91 = vmatpush.xpose.msra.mxu0 0.0
    %92 = vmatpush.xpose.msra.mxu0 0.0
    %93 = vmatpush.xpose.msra.mxu0 0.0
    %94 = vmatpush.xpose.msra.mxu0 0.0
    %95 = vmatpush.xpose.msra.mxu0 0.0
    %96 = vmatpush.xpose.msra.mxu0 %v79
    %97 = vmatmul.f32.gmra.mxu0 %v76
    %v98 = vpop.f32.mrf.mxu0
    %v99 = vadd.f32 0.0, %v98
    %100 = vdwg.mxu0
    %vm101 = vcmask 64512
    %v102 = vsel %vm101, %v73, -inf
    %103 = vmax.xlane.f32.xlu0 %v102
    %v104 = vpop.xlane.xlu0 %103
    %v105 = vsel %vm101, %v99, -inf
    %106 = vmax.xlane.f32.xlu0 %v105
    %v107 = vpop.xlane.xlu0 %106
    %v108 = vsub.f32 %v73, %v104
    %v109 = vsub.f32 %v99, %v107
    %v110 = vmul.f32 %v108, 1.442695
    %v111 = vpow.pop %v110
    %v112 = vmul.f32 %v109, 1.442695
    %v113 = vpow.pop %v112
    %v114 = vsel %vm101, %v111, 0.0
    %115 = vadd.xlane.f32.xlu0 %v114
    %v116 = vpop.xlane.xlu0 %115
    %v117 = vsel %vm101, %v113, 0.0
    %118 = vadd.xlane.f32.xlu0 %v117
    %v119 = vpop.xlane.xlu0 %118
    %v121 = vsel %vm101, %v111, 0
    %123 = vmatpush.msra.mxu0 0.0
    %124 = vmatpush.msra.mxu0 0.0
    %125 = vmatpush.msra.mxu0 0.0
    %126 = vmatpush.msra.mxu0 0.0
    %127 = vmatpush.msra.mxu0 0.0
    %128 = vmatpush.msra.mxu0 0.0
    %129 = vmatpush.msra.mxu0 0.0
    %130 = vmatpush.msra.mxu0 0.0
    %131 = vmatpush.msra.mxu0 0.0
    %132 = vmatpush.msra.mxu0 0.0
    %133 = vmatpush.msra.mxu0 0.0
    %134 = vmatpush.msra.mxu0 0.0
    %135 = vmatpush.msra.mxu0 0.0
    %136 = vmatpush.msra.mxu0 0.0
    %137 = vmatpush.msra.mxu0 0.0
    %138 = vmatpush.msra.mxu0 %v46
    %139 = vmatmul.f32.gmra.mxu0 %v121
    %v140 = vpop.f32.mrf.mxu0
    %v141 = vadd.f32 0.0, %v140
    %142 = vdwg.mxu0
    %v144 = vsel %vm101, %v113, 0
    %146 = vmatpush.msra.mxu0 0.0
    %147 = vmatpush.msra.mxu0 0.0
    %148 = vmatpush.msra.mxu0 0.0
    %149 = vmatpush.msra.mxu0 0.0
    %150 = vmatpush.msra.mxu0 0.0
    %151 = vmatpush.msra.mxu0 0.0
    %152 = vmatpush.msra.mxu0 0.0
    %153 = vmatpush.msra.mxu0 0.0
    %154 = vmatpush.msra.mxu0 0.0
    %155 = vmatpush.msra.mxu0 0.0
    %156 = vmatpush.msra.mxu0 0.0
    %157 = vmatpush.msra.mxu0 0.0
    %158 = vmatpush.msra.mxu0 0.0
    %159 = vmatpush.msra.mxu0 0.0
    %160 = vmatpush.msra.mxu0 0.0
    %161 = vmatpush.msra.mxu0 %v47
    %162 = vmatmul.f32.gmra.mxu0 %v144
    %v163 = vpop.f32.mrf.mxu0
    %v164 = vadd.f32 0.0, %v163
    %165 = vdwg.mxu0
    %v166 = vrcp.pop %v116
    %v167 = vrcp.pop %v119
    %v168 = vmul.f32 %v141, %v166
    %v169 = vmul.f32 %v164, %v167
    %170 = vst.msk [vmem:[#allocation7] sm:$0xff] %vm48, %v168
    %171 = vst.msk [vmem:[#allocation7 + $0x8] sm:$0xff] %vm48, %v169
    // Predicated region
    $region18: #{tpu_custom_call.1} parent=1 // pred_check
      _
    $region19: #{tpu_custom_call.1} parent=1 // pred_check_branch
      %173 = sbr.rel (0) target = $region21
    $region20: #{tpu_custom_call.1} parent=1 // pred_region
      %175 = vsyncadd [#allocation4], 0
      %s176 = sshll.u32 [#allocation7], 4
      %s177 = int_to_ptr.vmem [resolvable:$true] %s176
      %s178 = sshll.u32 %s2, 4
      %s179 = int_to_ptr.hbm [resolvable:$true] %s178
      %184 = dma.vmem_to_hbm [thread:$0]  %s177, 256, %s179, [#allocation4], 128, 128, 8
    $region21: #{tpu_custom_call.1} parent=1 // pred_fallthru
      _
    // Predicated region
    $region22: #{tpu_custom_call.1} parent=1 // pred_check
      _
    $region23: #{tpu_custom_call.1} parent=1 // pred_check_branch
      %186 = sbr.rel (0) target = $region25
    $region24: #{tpu_custom_call.1} parent=1 // pred_region
      %188 = dma.done [#allocation4], 256
    $region25: #{tpu_custom_call.1} parent=1 // pred_fallthru
      _
    %189 = vsyncpa [#allocation3], 1
    %190 = vsyncpa [#allocation6], 1
    %191 = vsyncpa [#allocation4], 1

</llo_original>
